<compile_context>
chip_gen: v7x
topology: tpu7x:2x2x1
jax: 0.10.0
libtpu: 0.0.40
codegen_flags: <defaults>
</compile_context>

<pallas_src>
import functools

import jax
import jax.numpy as jnp
from jax.experimental import pallas as pl
from jax.experimental.pallas import tpu as pltpu

_LANE = 128
# Combined (input + output) single-buffer block budget.  Double-buffering puts
# ~2x this in flight plus elementwise intermediates; 4 MiB keeps the total well
# inside every generation's scoped VMEM while blocks this size already reach
# the HBM roofline (measured tile sweeps: >=2-4 MiB => ~85%+ of roofline).
_BLOCK_BUDGET = 4 << 20


def _ha_kernel(x_ref, o_ref, *, inv_t):
    # x_ref: (b_blk, T, n_blk)      -- N on lanes, T on sublanes
    # o_ref: (b_blk, o_blk, n_blk)
    x = x_ref[...].astype(jnp.float32)                               # f32 accumulation
    mean = jnp.sum(x, axis=1, keepdims=True) * jnp.float32(inv_t)    # (b_blk, 1, n_blk)
    # Sublane-broadcast the mean row to every output time slot (lane-dense
    # store).  Recomputing this tiny sublane sum per out_len tile is free in a
    # DMA-bound regime; the input block is resident across the out_len axis.
    o_ref[...] = jnp.broadcast_to(mean, o_ref.shape).astype(o_ref.dtype)


def _round_up(v, m):
    return ((v + m - 1) // m) * m


def _pick_tiles(B, T, N, out_len, itemsize):
    """Choose (b_blk, n_blk, o_blk) from the combined in+out byte budget."""
    # Output time tile: full out_len when small, else multiple-of-8 chunks so a
    # large out_len never dominates VMEM (the input block stays resident across
    # the out_len grid axis, so out_len tiling costs no extra input DMA).
    o_blk = out_len if out_len <= 512 else 512

    rows = T + o_blk  # combined sublane rows (in + out) per (batch, lane-tile)

    # Lane (N) tile: full N when it is a single lane tile, otherwise a multiple
    # of 128 derived from the byte budget (so small B / small T still get wide,
    # lane-dense blocks instead of thousands of tiny grid steps).
    if N <= _LANE:
        n_blk = N  # full dim satisfies the (8,128) rule even when < 128
    else:
        lanes = max(_LANE, (_BLOCK_BUDGET // max(rows * itemsize, 1)) // _LANE * _LANE)
        n_blk = min(_round_up(N, _LANE), lanes)

    # Batch tile from the remaining combined budget.
    per_batch = rows * n_blk * itemsize
    b_blk = max(1, min(B, _BLOCK_BUDGET // max(per_batch, 1)))

    # Megacore: guarantee >= 2 grid steps on a 'parallel' axis so both v7x
    # TensorCores are fed on this mem-bound kernel (split B first, then N).
    def _steps():
        return pl.cdiv(B, b_blk) * pl.cdiv(N, n_blk)

    if _steps() < 2:
        if B > 1:
            b_blk = pl.cdiv(B, 2)
        elif N > _LANE:
            n_blk = max(_LANE, _round_up(pl.cdiv(n_blk, 2), _LANE))
    # TODO(synk): if production N < 128, fold dims so the lane axis is >= 128
    # (otherwise stores are masked vst.msk); the tiny shapes here don't warrant it.

    return b_blk, n_blk, o_blk


@functools.partial(jax.jit, static_argnums=(2,))
def ha_forward(x, a, out_len):
    """Pallas equivalent of _HA.forward. `a` is kept for parameter parity only."""
    del a  # multiplied by zeros and every slot overwritten in the reference -> no effect
    B, T, N, _F = x.shape

    # Feature-0 slice kept at the JAX level but fused into the pallas_call via
    # allow_input_fusion: no standalone [B,T,N] HBM round-trip.
    x0 = x[..., 0]                                     # (B, T, N)
    itemsize = x0.dtype.itemsize

    b_blk, n_blk, o_blk = _pick_tiles(B, T, N, out_len, itemsize)
    grid = (pl.cdiv(B, b_blk), pl.cdiv(N, n_blk), pl.cdiv(out_len, o_blk))

    cost = pl.CostEstimate(
        flops=B * T * N,                               # the time-sum adds
        transcendentals=0,
        bytes_accessed=(B * T * N + B * out_len * N) * itemsize,
    )

    out0 = pl.pallas_call(
        functools.partial(_ha_kernel, inv_t=1.0 / T),
        out_shape=jax.ShapeDtypeStruct((B, out_len, N), x.dtype),
        grid=grid,
        in_specs=[pl.BlockSpec((b_blk, T, n_blk), lambda bi, ni, oi: (bi, 0, ni))],
        out_specs=pl.BlockSpec((b_blk, o_blk, n_blk), lambda bi, ni, oi: (bi, oi, ni)),
        compiler_params=pltpu.CompilerParams(
            dimension_semantics=("parallel", "parallel", "arbitrary"),
            allow_input_fusion=[True],
            vmem_limit_bytes=32 << 20,
        ),
        cost_estimate=cost,
    )(x0)
    # TODO(synk): if in_len (T) can be very large, add an 'arbitrary' T-reduction
    # grid axis with an f32 VMEM accumulator instead of one (b_blk, T, n_blk) slab.

    # Trailing singleton feature dim added at the JAX level (free reshape).
    return out0[..., None]                             # (B, out_len, N, 1)


def _reference(x, out_len):
    B, T, N, _ = x.shape
    mean = jnp.sum(x[:, :, :, 0].astype(jnp.float32), axis=1) / T
    return jnp.broadcast_to(
        mean[:, None, :, None], (B, out_len, N, 1)).astype(x.dtype)


if __name__ == "__main__":
    key = jax.random.PRNGKey(0)
    kx, ka, kx2 = jax.random.split(key, 3)

    # Small shapes consistent with the module: batch=2, in_len=8, nodes=16, feats=4
    B, T, N, F = 2, 8, 16, 4
    out_len = 4  # args.output_window

    x = jax.random.normal(kx, (B, T, N, F), dtype=jnp.float32)
    # deterministic init of the module's single parameter: nn.Parameter(torch.rand(1))
    a = jax.random.uniform(ka, (1,), dtype=jnp.float32)

    y = ha_forward(x, a, out_len)
    y = jax.block_until_ready(y)

    ref = _reference(x, out_len)
    assert y.shape == (B, out_len, N, 1), y.shape
    assert y.dtype == x.dtype
    assert jnp.allclose(y, ref, atol=1e-5, rtol=1e-5)

    # Second small sanity shape exercising a full lane tile (N multiple of 128).
    B2, T2, N2, F2, out_len2 = 3, 12, 256, 2, 6
    x2 = jax.random.normal(kx2, (B2, T2, N2, F2), dtype=jnp.float32)
    y2 = jax.block_until_ready(ha_forward(x2, a, out_len2))
    assert y2.shape == (B2, out_len2, N2, 1)
    assert jnp.allclose(y2, _reference(x2, out_len2), atol=1e-5, rtol=1e-5)

    print("KERNEL_OK")
</pallas_src>

<mosaic_0001>
module attributes {stable_mosaic.version = 11 : i64} {
  func.func @_ha_kernel(%arg0: i32, %arg1: i32, %arg2: i32, %arg3: memref<1x8x16xf32, #tpu.memory_space<vmem>>, %arg4: memref<1x4x16xf32, #tpu.memory_space<vmem>>) attributes {dimension_semantics = [#tpu.dimension_semantics<parallel>, #tpu.dimension_semantics<parallel>, #tpu.dimension_semantics<arbitrary>], iteration_bounds = array<i64: 2, 1, 1>, scalar_prefetch = 0 : i64, scratch_operands = 0 : i64, tpu.core_type = #tpu.core_type<tc>, window_params = [{transform_indices = @transform_0, window_bounds = array<i64: 1, 8, 16>}, {transform_indices = @transform_1, window_bounds = array<i64: 1, 4, 16>}]} {
    %c0 = arith.constant 0 : index
    %c0_0 = arith.constant 0 : index
    %c0_1 = arith.constant 0 : index
    %0 = vector.load %arg3[%c0, %c0_0, %c0_1] : memref<1x8x16xf32, #tpu.memory_space<vmem>>, vector<1x8x16xf32>
    %cst = arith.constant dense<0.000000e+00> : vector<1x16xf32>
    %1 = vector.multi_reduction <add>, %0, %cst [1] : vector<1x8x16xf32> to vector<1x16xf32>
    %2 = vector.shape_cast %1 : vector<1x16xf32> to vector<1x1x16xf32>
    %cst_2 = arith.constant 1.250000e-01 : f32
    %3 = vector.broadcast %cst_2 : f32 to vector<1x1x16xf32>
    %4 = arith.mulf %2, %3 : vector<1x1x16xf32>
    %5 = vector.shape_cast %4 : vector<1x1x16xf32> to vector<1x1x16xf32>
    %6 = vector.broadcast %5 : vector<1x1x16xf32> to vector<1x4x16xf32>
    %c0_3 = arith.constant 0 : index
    %c0_4 = arith.constant 0 : index
    %c0_5 = arith.constant 0 : index
    %7 = vector.load %arg4[%c0_3, %c0_4, %c0_5] : memref<1x4x16xf32, #tpu.memory_space<vmem>>, vector<1x4x16xf32>
    tpu.vector_store %arg4[%c0_3, %c0_4, %c0_5], %6 {strides = array<i32>} : memref<1x4x16xf32, #tpu.memory_space<vmem>>, vector<1x4x16xf32>,
    return
  }
  func.func @transform_0(%arg0: i32, %arg1: i32, %arg2: i32) -> (i32, i32, i32) {
    %c0_i32 = arith.constant 0 : i32
    %c0_i32_0 = arith.constant 0 : i32
    return %arg0, %c0_i32, %arg1 : i32, i32, i32
  }
  func.func @transform_1(%arg0: i32, %arg1: i32, %arg2: i32) -> (i32, i32, i32) {
    %c0_i32 = arith.constant 0 : i32
    return %arg0, %arg2, %arg1 : i32, i32, i32
  }
}

</mosaic_0001>

<llo_original>
// kernel: ha_forward.1
$region0: #{ha_forward.1}
  #allocation0 [shape = 'u32[]', space=smem, size = 0x4, offset = 0x4, fixed_abs, tag = 'smem constant byte address 0x4 - core index']
  #allocation1 [shape = 'u32[144,128]{1,0:T(1,128)}', space=vmem, size = 0x12000, scoped, tag = 'internal scratch']
  %s0 = inlined_call_operand.vmem [shape: f32[2,8,16], index: 0, kind: input, shape index: {}]
  %s1 = inlined_call_operand.hbm [shape: f32[2,4,16], index: 1, kind: output, shape index: {}]
  %s2 = sld [smem:[#allocation0]]
  $region37: #{ha_forward.1} parent=0
    _
  %s4 = ssub.s32 1, %s2
  %s5 = scalar_select 0, %s4, %s2
  $region1: #{ha_forward.1} parent=0
    #allocation2 [shape = 'u8[4096]{0}', space=vmem, size = 0x1000, scoped, tag = 'output window, operand 0']
    #allocation3 [shape = 's32[2]{0}', space=sflag, size = 0x8, scoped, tag = 'scoped memory for ha_forward.1']
    %6 = vsyncpa [#allocation3], 0
    %s7 = scalar_lea.sflag [#allocation3], 1
    %8 = vsyncpa %s7, 0
    loop: start=0, step=1, limit=4
    $region2: #{ha_forward.1} parent=1 // loop_pre_header
      _
    $region3: #{ha_forward.1} parent=1 // loop_header
      %s10 = sphi 0, %s14
      %p11 = scmp.ge.s32.totalorder %s10, 4
      %s17 = sphi 0, %s36
      %s18 = sphi 0, %s32
      %s19 = sphi 0, %s28
      %s20 = sphi 0, %s17
      %s21 = sphi 0, %s18
      %s22 = sphi 0, %s19
      %s23 = sphi 0, %s20
      %s24 = sphi 0, %s21
      %s25 = sphi 0, %s22
      %s41 = sphi 0, %s43
      %s44 = sphi 0, %s41
      %s45 = sphi 0, %s44
      %s61 = sphi 0, %s45
      %s71 = sphi 0, %s73
      %s74 = sphi 0, %s71
      %s75 = sphi 0, %s74
      %s91 = sphi 0, %s75
    $region4: #{ha_forward.1} parent=1 // loop_header_branch
      %13 = sbr.rel (%p11) target = $region8
    $region5: #{ha_forward.1} parent=1 // loop_body
      %s15 = ssub.s32 %s10, 1
      %s16 = ssub.s32 %s10, 2
      %s26 = sadd.s32 1, %s19
      %p27 = scmp.ge.s32.totalorder %s26, 1
      %s28 = scalar_select %p27, 0, %s26
      %s29 = sadd.s32 1, %s18
      %s30 = scalar_select %p27, %s29, %s18
      %p31 = scmp.ge.s32.totalorder %s30, 1
      %s32 = scalar_select %p31, 0, %s30
      %s33 = sadd.s32 1, %s17
      %s34 = scalar_select %p31, %s33, %s17
      %p35 = scmp.ge.s32.totalorder %s34, 2
      %s36 = scalar_select %p35, 0, %s34
      %s37 = ssub.s32 %s17, %s36
      %s38 = ssub.s32 %s18, %s32
      %s39 = sor.u32 %s37, %s38
      %p40 = scmp.eq.s32.totalorder %s39, 0
      %s42 = sadd.s32 %s41, 1
      %s43 = scalar_select %p40, %s41, %s42
      %p46 = pneg %p40
      %p47 = scmp.eq.s32.totalorder %s10, 1
      %p48 = por %p46, %p47
      %p49 = scmp.ne.s32.totalorder %s41, %s44
      %p50 = scmp.eq.s32.totalorder %s10, 0
      %p51 = por %p49, %p50
      %p52 = scmp.ne.s32.totalorder %s41, %s44
      %p53 = scmp.eq.s32.totalorder %s15, 1
      %p54 = por %p52, %p53
      %p55 = scmp.ne.s32.totalorder %s44, %s45
      %p56 = scmp.eq.s32.totalorder %s15, 0
      %p57 = por %p55, %p56
      %p58 = scmp.ne.s32.totalorder %s44, %s45
      %p59 = scmp.eq.s32.totalorder %s16, 1
      %p60 = por %p58, %p59
      %p62 = scmp.ne.s32.totalorder %s45, %s61
      %p63 = scmp.eq.s32.totalorder %s16, 0
      %p64 = por %p62, %p63
      %s65 = ssub.s32 %s17, %s36
      %s66 = ssub.s32 %s19, %s28
      %s67 = sor.u32 %s65, %s66
      %s68 = ssub.s32 %s18, %s32
      %s69 = sor.u32 %s67, %s68
      %p70 = scmp.eq.s32.totalorder %s69, 0
      %s72 = sadd.s32 %s71, 1
      %s73 = scalar_select %p70, %s71, %s72
      %p76 = pneg %p70
      %p77 = scmp.eq.s32.totalorder %s10, 1
      %p78 = por %p76, %p77
      %p79 = scmp.ne.s32.totalorder %s71, %s74
      %p80 = scmp.eq.s32.totalorder %s10, 0
      %p81 = por %p79, %p80
      %p82 = scmp.ne.s32.totalorder %s71, %s74
      %p83 = scmp.eq.s32.totalorder %s15, 1
      %p84 = por %p82, %p83
      %p85 = scmp.ne.s32.totalorder %s74, %s75
      %p86 = scmp.eq.s32.totalorder %s15, 0
      %p87 = por %p85, %p86
      %p88 = scmp.ne.s32.totalorder %s74, %s75
      %p89 = scmp.eq.s32.totalorder %s16, 1
      %p90 = por %p88, %p89
      %p92 = scmp.ne.s32.totalorder %s75, %s91
      %p93 = scmp.eq.s32.totalorder %s16, 0
      %p94 = por %p92, %p93
      %p95 = scmp.le.s32.totalorder 1, %s10
      %p96 = scmp.lt.s32.totalorder %s10, 3
      %p97 = pnand %p95, %p96
      %p98 = pneg %p97
      // Predicated region
      $region9: #{ha_forward.1} parent=5 // pred_check
        _
      $region10: #{ha_forward.1} parent=5 // pred_check_branch
        %100 = sbr.rel (%p97) target = $region12
      $region11: #{ha_forward.1} parent=5 // pred_region
        %s101 = ssub.s32 %s10, 1
      $region12: #{ha_forward.1} parent=5 // pred_fallthru
        _
      %p102 = scmp.lt.s32.totalorder %s10, 2
      // Predicated region
      $region13: #{ha_forward.1} parent=5 // pred_check
        %p103 = pneg %p102
      $region14: #{ha_forward.1} parent=5 // pred_check_branch
        %105 = sbr.rel (%p103) target = $region16
      $region15: #{ha_forward.1} parent=5 // pred_region
        // Predicated region
        $region17: #{ha_forward.1} parent=15 // pred_check
          %p106 = pneg %p51
        $region18: #{ha_forward.1} parent=15 // pred_check_branch
          %108 = sbr.rel (%p106) target = $region20
        $region19: #{ha_forward.1} parent=15 // pred_region
          %p109 = scmp.lt.s32.totalorder %s17, 1
          %s110 = scalar_select %p109, %s17, 1
          %p111 = scmp.lt.s32.totalorder %s18, 0
          %s112 = scalar_select %p111, %s18, 0
          %s113 = sadd.s32 %s112, %s110
          %s114 = smul.addr %s113, 8
          %s115 = scalar_lea.vmem %s0, %s114
        $region20: #{ha_forward.1} parent=15 // pred_fallthru
          _
      $region16: #{ha_forward.1} parent=5 // pred_fallthru
        _
      %p116 = scmp.le.s32.totalorder 1, %s10
      %p117 = scmp.lt.s32.totalorder %s10, 3
      %p118 = pnand %p116, %p117
      %p119 = pneg %p118
      // Predicated region
      $region21: #{ha_forward.1} parent=5 // pred_check
        _
      $region22: #{ha_forward.1} parent=5 // pred_check_branch
        %121 = sbr.rel (%p118) target = $region24
      $region23: #{ha_forward.1} parent=5 // pred_region
        %s122 = ssub.s32 %s10, 1
        %p123 = scmp.lt.s32.totalorder %s20, 1
        %s124 = scalar_select %p123, %s20, 1
        %p125 = scmp.lt.s32.totalorder %s21, 0
        %s126 = scalar_select %p125, %s21, 0
        %s127 = sadd.s32 %s126, %s124
        %s128 = smul.addr %s127, 8
        %s129 = scalar_lea.vmem %s0, %s128
        %p130 = pneg %p57
        %p131 = pneg %p54
        %p132 = pneg %p87
        %p133 = pneg %p84
        %s134 = sand.u32 %s74, 1
        %s135 = scalar_lea.sflag [#allocation3], %s134
        %s136 = sand.u32 %s74, 1
        %s137 = smul.addr %s136, 4
        %s138 = scalar_lea.vmem [#allocation2], %s137
        %p139 = scmp.lt.s32.totalorder %s20, 1
        %s140 = scalar_select %p139, %s20, 1
        %p141 = scmp.lt.s32.totalorder %s21, 0
        %s142 = scalar_select %p141, %s21, 0
        %s143 = sadd.s32 %s142, %s140
        %s144 = smul.addr %s143, 8
        %s145 = scalar_lea.vmem %s0, %s144
        %v146 = vld [vmem:[%s145] sm:$0xff]
        %vm147 = vcmask 130048
        %v148 = vsel %vm147, %v146, 0.0
        %v149 = vrot.slane %v148, 4
        %v150 = vadd.f32 %v148, %v149
        %v151 = vrot.slane %v150, 2
        %v152 = vadd.f32 %v150, %v151
        %v153 = vrot.slane %v152, 1
        %v154 = vadd.f32 %v152, %v153
        %v155 = vmul.f32 %v154, 0.125
        %vm156 = vcmask 125952
        %157 = vst.msk [vmem:[%s138] sm:$0xf] %vm156, %v155
        %s158 = sand.u32 %s74, 1
        %s159 = scalar_lea.sflag [#allocation3], %s158
        %s160 = sand.u32 %s74, 1
        %s161 = smul.addr %s160, 4
        %s162 = scalar_lea.vmem [#allocation2], %s161
        // Predicated region
        $region25: #{ha_forward.1} parent=23 // pred_check
          %p163 = pneg %p84
        $region26: #{ha_forward.1} parent=23 // pred_check_branch
          %165 = sbr.rel (%p163) target = $region28
        $region27: #{ha_forward.1} parent=23 // pred_region
          %s167 = ssub.s32 64, 64
          %168 = vsyncadd %s159, %s167
          %s169 = sadd.s32 %s21, %s22
          %s170 = sadd.s32 %s169, %s20
          %s171 = smul.addr %s170, 64
          %s172 = scalar_lea.hbm %s1, %s171
          %s174 = sshll.u32 %s162, 4
          %s175 = int_to_ptr.vmem [resolvable:$true] %s174
          %177 = dma.vmem_to_hbm [thread:$0]  %s175, 64, %s172, %s159
        $region28: #{ha_forward.1} parent=23 // pred_fallthru
          _
      $region24: #{ha_forward.1} parent=5 // pred_fallthru
        _
      %p178 = scmp.le.s32.totalorder 2, %s10
      // Predicated region
      $region29: #{ha_forward.1} parent=5 // pred_check
        %p179 = pneg %p178
      $region30: #{ha_forward.1} parent=5 // pred_check_branch
        %181 = sbr.rel (%p179) target = $region32
      $region31: #{ha_forward.1} parent=5 // pred_region
        %s182 = ssub.s32 %s10, 2
        // Predicated region
        $region33: #{ha_forward.1} parent=31 // pred_check
          %p183 = pneg %p90
        $region34: #{ha_forward.1} parent=31 // pred_check_branch
          %185 = sbr.rel (%p183) target = $region36
        $region35: #{ha_forward.1} parent=31 // pred_region
          %s186 = sand.u32 %s75, 1
          %s187 = scalar_lea.sflag [#allocation3], %s186
          %s188 = sand.u32 %s75, 1
          %s189 = smul.addr %s188, 4
          %s190 = scalar_lea.vmem [#allocation2], %s189
          %191 = dma.done %s187, 64
        $region36: #{ha_forward.1} parent=31 // pred_fallthru
          _
      $region32: #{ha_forward.1} parent=5 // pred_fallthru
        _
    $region6: #{ha_forward.1} parent=1 // loop_footer
      %s14 = sadd.s32 1, %s10
    $region7: #{ha_forward.1} parent=1 // loop_footer_branch
      %9 = sbr.rel target = $region3
    $region8: #{ha_forward.1} parent=1 // loop_exit
      _
    %192 = vsyncpa [#allocation3], 1
    %s193 = scalar_lea.sflag [#allocation3], 1
    %194 = vsyncpa %s193, 1

</llo_original>
